<compile_context>
chip_gen: v6e
topology: v6e:2x2x1
jax: 0.10.0
libtpu: 0.0.40
codegen_flags: <defaults>
</compile_context>

<pallas_src>
import jax
import jax.numpy as jnp
import numpy as np
from jax.experimental import pallas as pl
from jax.experimental.pallas import tpu as pltpu


def residual_block_kernel(x_ref, w1a_ref, w1b_ref, w1c_ref, t1_ref,
                          w2_ref, t2b_ref, out_ref):
    H = out_ref.shape[1]
    WCo = out_ref.shape[2]

    x = x_ref[0]                                            # (H+2, W*Cin) f32

    # ---- conv1 (+ folded bias/BN1 scale+shift + ReLU) -----------------------
    # dh = 0 and dh = 2 taps: plain banded matmuls.
    acc1 = jnp.dot(x[0:H], w1a_ref[...], preferred_element_type=jnp.float32)
    acc1 = acc1 + jnp.dot(x[2:H + 2], w1c_ref[...],
                          preferred_element_type=jnp.float32)
    # dh = 1 tap fused with the identity-path 1x1 conv: shared LHS, the RHS is
    # [conv1_dh1 | wadj] hstacked, split at the 128-lane-aligned boundary.
    mid = jnp.dot(x[1:H + 1], w1b_ref[...],
                  preferred_element_type=jnp.float32)       # (H, 2*W*Cout)
    acc1 = acc1 + mid[:, 0:WCo]
    idn = mid[:, WCo:2 * WCo]                               # identity path

    h1 = jnp.maximum(acc1 + t1_ref[...], 0.0)               # (H, W*Cout)

    # conv2 needs one zero row of height padding top/bottom; the width
    # padding is already folded into the banded weights.
    zrow = jnp.zeros((1, WCo), dtype=jnp.float32)
    h1p = jnp.concatenate([zrow, h1, zrow], axis=0)         # (H+2, W*Cout)

    # ---- conv2 (+ folded bias/BN2; dropout = identity in eval mode) ---------
    acc2 = jnp.dot(h1p[0:H], w2_ref[0], preferred_element_type=jnp.float32)
    acc2 = acc2 + jnp.dot(h1p[1:H + 1], w2_ref[1],
                          preferred_element_type=jnp.float32)
    acc2 = acc2 + jnp.dot(h1p[2:H + 2], w2_ref[2],
                          preferred_element_type=jnp.float32)

    out = jnp.maximum(acc2 + t2b_ref[...] + idn, 0.0)
    out_ref[0] = out.astype(out_ref.dtype)


def residual_block_pallas(x_nhwc, kp):
    N, H, W, Cin = x_nhwc.shape
    WCin = W * Cin
    WCout = int(kp["t1"].shape[-1])
    Cout = WCout // W

    # Pad height only (width padding is folded into the banded weights) and
    # flatten (W, Cin) -> lane-dense W*Cin.
    xpad = jnp.pad(x_nhwc, ((0, 0), (1, 1), (0, 0), (0, 0)))
    xpad = xpad.reshape(N, H + 2, WCin)

    vec = lambda: pl.BlockSpec((1, WCout), lambda n: (0, 0))
    out = pl.pallas_call(
        residual_block_kernel,
        out_shape=jax.ShapeDtypeStruct((N, H, WCout), x_nhwc.dtype),
        grid_spec=pltpu.PrefetchScalarGridSpec(
            num_scalar_prefetch=0,
            grid=(N,),
            in_specs=[
                pl.BlockSpec((1, H + 2, WCin), lambda n: (n, 0, 0)),
                pl.BlockSpec((WCin, WCout), lambda n: (0, 0)),       # w1 dh=0
                pl.BlockSpec((WCin, 2 * WCout), lambda n: (0, 0)),   # w1 dh=1 | wadj
                pl.BlockSpec((WCin, WCout), lambda n: (0, 0)),       # w1 dh=2
                vec(),                                               # t1
                pl.BlockSpec((3, WCout, WCout), lambda n: (0, 0, 0)),
                vec(),                                               # t2 + badj
            ],
            out_specs=pl.BlockSpec((1, H, WCout), lambda n: (n, 0, 0)),
        ),
        compiler_params=pltpu.CompilerParams(
            dimension_semantics=("parallel",)),
    )(xpad, kp["w1a"], kp["w1b"], kp["w1c"], kp["t1"], kp["w2"], kp["t2b"])
    return out.reshape(N, H, W, Cout)


# ------------------- parameter setup (deterministic, synthetic) -------------
def make_torch_params(key, cin, cout):
    ks = jax.random.split(key, 16)
    w1 = 0.1 * jax.random.normal(ks[0], (cout, cin, 3, 3), jnp.float32)   # OIHW
    b1 = 0.1 * jax.random.normal(ks[1], (cout,), jnp.float32)
    g1 = 1.0 + 0.1 * jax.random.normal(ks[2], (cout,), jnp.float32)
    be1 = 0.1 * jax.random.normal(ks[3], (cout,), jnp.float32)
    m1 = 0.1 * jax.random.normal(ks[4], (cout,), jnp.float32)
    v1 = jax.random.uniform(ks[5], (cout,), jnp.float32, 0.5, 1.5)

    w2 = 0.1 * jax.random.normal(ks[6], (cout, cout, 3, 3), jnp.float32)
    b2 = 0.1 * jax.random.normal(ks[7], (cout,), jnp.float32)
    g2 = 1.0 + 0.1 * jax.random.normal(ks[8], (cout,), jnp.float32)
    be2 = 0.1 * jax.random.normal(ks[9], (cout,), jnp.float32)
    m2 = 0.1 * jax.random.normal(ks[10], (cout,), jnp.float32)
    v2 = jax.random.uniform(ks[11], (cout,), jnp.float32, 0.5, 1.5)

    wadj = 0.1 * jax.random.normal(ks[12], (cout, cin, 1, 1), jnp.float32)
    badj = 0.1 * jax.random.normal(ks[13], (cout,), jnp.float32)

    return dict(w1=w1, b1=b1, g1=g1, be1=be1, m1=m1, v1=v1,
                w2=w2, b2=b2, g2=g2, be2=be2, m2=m2, v2=v2,
                wadj=wadj, badj=badj)


def make_kernel_params(tl, W, eps=1e-5):
    p = {k: np.asarray(v, np.float32) for k, v in tl.items()}
    cout, cin = p["w1"].shape[0], p["w1"].shape[1]

    # Fold eval-mode BN into per-output-channel scale/shift; the scale is
    # folded directly into the conv weights (column scaling of the banded
    # matrices), only the shift remains as an in-kernel add.
    s1 = p["g1"] / np.sqrt(p["v1"] + eps)
    t1 = p["be1"] + (p["b1"] - p["m1"]) * s1
    s2 = p["g2"] / np.sqrt(p["v2"] + eps)
    t2 = p["be2"] + (p["b2"] - p["m2"]) * s2

    def banded(w_oihw):
        # (Cout, Cin, 3, 3) OIHW -> 3 block-banded matrices (W*Cin, W*Cout),
        # one per kernel row dh, folding the dw taps and width padding=1.
        co, ci, kh, kw = w_oihw.shape
        tap = np.transpose(w_oihw, (2, 3, 1, 0))            # (kh, kw, ci, co)
        mats = np.zeros((kh, W * ci, W * co), np.float32)
        for dh in range(kh):
            for w in range(W):
                for dw in range(kw):
                    wi = w + dw - 1                          # padding = 1
                    if 0 <= wi < W:
                        mats[dh, wi * ci:(wi + 1) * ci,
                             w * co:(w + 1) * co] = tap[dh, dw]
        return mats

    w1_scaled = p["w1"] * s1[:, None, None, None]            # fold BN1 scale
    w2_scaled = p["w2"] * s2[:, None, None, None]            # fold BN2 scale
    b1 = banded(w1_scaled)                                    # (3, WCin, WCout)
    b2 = banded(w2_scaled)                                    # (3, WCout, WCout)

    wadj2d = np.transpose(p["wadj"].reshape(cout, cin))       # (cin, cout)
    wadj_band = np.kron(np.eye(W, dtype=np.float32), wadj2d)  # (WCin, WCout)

    tile = lambda v: np.tile(v.astype(np.float32), W).reshape(1, W * cout)

    return dict(
        w1a=jnp.asarray(b1[0]),
        # dh=1 conv1 tap fused (hstacked) with the 1x1 identity conv weights:
        w1b=jnp.asarray(np.concatenate([b1[1], wadj_band], axis=1)),
        w1c=jnp.asarray(b1[2]),
        t1=jnp.asarray(tile(t1)),
        w2=jnp.asarray(b2),
        t2b=jnp.asarray(tile(t2 + p["badj"])),                # fold 1x1 bias
    )


# ------------------- pure-JAX reference (mirrors PyTorch eval forward) ------
def reference_nchw(x, p, eps=1e-5):
    def conv(x, w, b, pad):
        y = jax.lax.conv_general_dilated(
            x, w, window_strides=(1, 1), padding=[(pad, pad), (pad, pad)],
            dimension_numbers=("NCHW", "OIHW", "NCHW"))
        return y + b[None, :, None, None]

    def bn(y, g, be, m, v):
        return ((y - m[None, :, None, None])
                / jnp.sqrt(v + eps)[None, :, None, None]
                * g[None, :, None, None] + be[None, :, None, None])

    identity = conv(x, p["wadj"], p["badj"], 0)
    out = jnp.maximum(bn(conv(x, p["w1"], p["b1"], 1),
                         p["g1"], p["be1"], p["m1"], p["v1"]), 0.0)
    out = bn(conv(out, p["w2"], p["b2"], 1),
             p["g2"], p["be2"], p["m2"], p["v2"])
    return jnp.maximum(out + identity, 0.0)


if __name__ == "__main__":
    N, Cin, Cout, H, W = 2, 4, 8, 16, 16
    key = jax.random.PRNGKey(0)
    kx, kp = jax.random.split(key)
    x_nchw = jax.random.normal(kx, (N, Cin, H, W), jnp.float32)

    torch_like = make_torch_params(kp, Cin, Cout)
    kernel_params = make_kernel_params(torch_like, W)

    x_nhwc = jnp.transpose(x_nchw, (0, 2, 3, 1))
    out_nhwc = residual_block_pallas(x_nhwc, kernel_params)
    out_nhwc = jax.block_until_ready(out_nhwc)
    out_nchw = jnp.transpose(out_nhwc, (0, 3, 1, 2))

    ref = reference_nchw(x_nchw, torch_like)
    np.testing.assert_allclose(np.asarray(out_nchw), np.asarray(ref),
                               rtol=1e-4, atol=1e-4)
    print("KERNEL_OK")
</pallas_src>

<mosaic_0001>
module attributes {stable_mosaic.version = 11 : i64} {
  func.func @residual_block_kernel(%arg0: i32, %arg1: memref<1x18x64xf32, #tpu.memory_space<vmem>>, %arg2: memref<64x128xf32, #tpu.memory_space<vmem>>, %arg3: memref<64x256xf32, #tpu.memory_space<vmem>>, %arg4: memref<64x128xf32, #tpu.memory_space<vmem>>, %arg5: memref<1x128xf32, #tpu.memory_space<vmem>>, %arg6: memref<3x128x128xf32, #tpu.memory_space<vmem>>, %arg7: memref<1x128xf32, #tpu.memory_space<vmem>>, %arg8: memref<1x16x128xf32, #tpu.memory_space<vmem>>) attributes {dimension_semantics = [#tpu.dimension_semantics<parallel>], iteration_bounds = array<i64: 2>, scalar_prefetch = 0 : i64, scratch_operands = 0 : i64, tpu.core_type = #tpu.core_type<tc>, window_params = [{transform_indices = @transform_0, window_bounds = array<i64: 1, 18, 64>}, {pipeline_mode = #tpu.pipeline_mode<synchronous>, transform_indices = @transform_1, window_bounds = array<i64: 64, 128>}, {pipeline_mode = #tpu.pipeline_mode<synchronous>, transform_indices = @transform_2, window_bounds = array<i64: 64, 256>}, {pipeline_mode = #tpu.pipeline_mode<synchronous>, transform_indices = @transform_3, window_bounds = array<i64: 64, 128>}, {pipeline_mode = #tpu.pipeline_mode<synchronous>, transform_indices = @transform_4, window_bounds = array<i64: 1, 128>}, {pipeline_mode = #tpu.pipeline_mode<synchronous>, transform_indices = @transform_5, window_bounds = array<i64: 3, 128, 128>}, {pipeline_mode = #tpu.pipeline_mode<synchronous>, transform_indices = @transform_6, window_bounds = array<i64: 1, 128>}, {transform_indices = @transform_7, window_bounds = array<i64: 1, 16, 128>}]} {
    %c0 = arith.constant 0 : index
    %c0_0 = arith.constant 0 : index
    %c0_1 = arith.constant 0 : index
    %0 = vector.load %arg1[%c0, %c0_0, %c0_1] : memref<1x18x64xf32, #tpu.memory_space<vmem>>, vector<1x18x64xf32>
    %1 = vector.shape_cast %0 : vector<1x18x64xf32> to vector<18x64xf32>
    %2 = vector.extract_strided_slice %1 {offsets = [0, 0], sizes = [16, 64], strides = [1, 1]} : vector<18x64xf32> to vector<16x64xf32>
    %c0_2 = arith.constant 0 : index
    %c0_3 = arith.constant 0 : index
    %3 = vector.load %arg2[%c0_2, %c0_3] : memref<64x128xf32, #tpu.memory_space<vmem>>, vector<64x128xf32>
    %cst = arith.constant dense<0.000000e+00> : vector<16x128xf32>
    %4 = tpu.matmul %2, %3, %cst {dimension_numbers = #tpu.dot_dimension_numbers<[1], [0], [0], [1], [0, 0, 1, 1], [], []>} : vector<16x64xf32>, vector<64x128xf32>, vector<16x128xf32> -> vector<16x128xf32>
    %5 = vector.extract_strided_slice %1 {offsets = [2, 0], sizes = [16, 64], strides = [1, 1]} : vector<18x64xf32> to vector<16x64xf32>
    %c0_4 = arith.constant 0 : index
    %c0_5 = arith.constant 0 : index
    %6 = vector.load %arg4[%c0_4, %c0_5] : memref<64x128xf32, #tpu.memory_space<vmem>>, vector<64x128xf32>
    %cst_6 = arith.constant dense<0.000000e+00> : vector<16x128xf32>
    %7 = tpu.matmul %5, %6, %cst_6 {dimension_numbers = #tpu.dot_dimension_numbers<[1], [0], [0], [1], [0, 0, 1, 1], [], []>} : vector<16x64xf32>, vector<64x128xf32>, vector<16x128xf32> -> vector<16x128xf32>
    %8 = arith.addf %4, %7 : vector<16x128xf32>
    %9 = vector.extract_strided_slice %1 {offsets = [1, 0], sizes = [16, 64], strides = [1, 1]} : vector<18x64xf32> to vector<16x64xf32>
    %c0_7 = arith.constant 0 : index
    %c0_8 = arith.constant 0 : index
    %10 = vector.load %arg3[%c0_7, %c0_8] : memref<64x256xf32, #tpu.memory_space<vmem>>, vector<64x256xf32>
    %cst_9 = arith.constant dense<0.000000e+00> : vector<16x256xf32>
    %11 = tpu.matmul %9, %10, %cst_9 {dimension_numbers = #tpu.dot_dimension_numbers<[1], [0], [0], [1], [0, 0, 1, 1], [], []>} : vector<16x64xf32>, vector<64x256xf32>, vector<16x256xf32> -> vector<16x256xf32>
    %12 = vector.extract_strided_slice %11 {offsets = [0, 0], sizes = [16, 128], strides = [1, 1]} : vector<16x256xf32> to vector<16x128xf32>
    %13 = arith.addf %8, %12 : vector<16x128xf32>
    %14 = vector.extract_strided_slice %11 {offsets = [0, 128], sizes = [16, 128], strides = [1, 1]} : vector<16x256xf32> to vector<16x128xf32>
    %c0_10 = arith.constant 0 : index
    %c0_11 = arith.constant 0 : index
    %15 = vector.load %arg5[%c0_10, %c0_11] : memref<1x128xf32, #tpu.memory_space<vmem>>, vector<1x128xf32>
    %16 = vector.broadcast %15 : vector<1x128xf32> to vector<16x128xf32>
    %17 = arith.addf %13, %16 : vector<16x128xf32>
    %cst_12 = arith.constant 0.000000e+00 : f32
    %18 = vector.broadcast %cst_12 : f32 to vector<16x128xf32>
    %19 = arith.maximumf %17, %18 : vector<16x128xf32>
    %cst_13 = arith.constant 0.000000e+00 : f32
    %20 = vector.broadcast %cst_13 : f32 to vector<1x128xf32>
    %21 = tpu.concatenate %20, %19, %20 in 0 : vector<1x128xf32>, vector<16x128xf32>, vector<1x128xf32> -> vector<18x128xf32>
    %22 = vector.extract_strided_slice %21 {offsets = [0, 0], sizes = [16, 128], strides = [1, 1]} : vector<18x128xf32> to vector<16x128xf32>
    %c0_14 = arith.constant 0 : index
    %c0_15 = arith.constant 0 : index
    %c0_16 = arith.constant 0 : index
    %23 = vector.load %arg6[%c0_14, %c0_15, %c0_16] : memref<3x128x128xf32, #tpu.memory_space<vmem>>, vector<1x128x128xf32>
    %24 = vector.shape_cast %23 : vector<1x128x128xf32> to vector<128x128xf32>
    %cst_17 = arith.constant dense<0.000000e+00> : vector<16x128xf32>
    %25 = tpu.matmul %22, %24, %cst_17 {dimension_numbers = #tpu.dot_dimension_numbers<[1], [0], [0], [1], [0, 0, 1, 1], [], []>} : vector<16x128xf32>, vector<128x128xf32>, vector<16x128xf32> -> vector<16x128xf32>
    %26 = vector.extract_strided_slice %21 {offsets = [1, 0], sizes = [16, 128], strides = [1, 1]} : vector<18x128xf32> to vector<16x128xf32>
    %c1 = arith.constant 1 : index
    %c0_18 = arith.constant 0 : index
    %c0_19 = arith.constant 0 : index
    %27 = vector.load %arg6[%c1, %c0_18, %c0_19] : memref<3x128x128xf32, #tpu.memory_space<vmem>>, vector<1x128x128xf32>
    %28 = vector.shape_cast %27 : vector<1x128x128xf32> to vector<128x128xf32>
    %cst_20 = arith.constant dense<0.000000e+00> : vector<16x128xf32>
    %29 = tpu.matmul %26, %28, %cst_20 {dimension_numbers = #tpu.dot_dimension_numbers<[1], [0], [0], [1], [0, 0, 1, 1], [], []>} : vector<16x128xf32>, vector<128x128xf32>, vector<16x128xf32> -> vector<16x128xf32>
    %30 = arith.addf %25, %29 : vector<16x128xf32>
    %31 = vector.extract_strided_slice %21 {offsets = [2, 0], sizes = [16, 128], strides = [1, 1]} : vector<18x128xf32> to vector<16x128xf32>
    %c2 = arith.constant 2 : index
    %c0_21 = arith.constant 0 : index
    %c0_22 = arith.constant 0 : index
    %32 = vector.load %arg6[%c2, %c0_21, %c0_22] : memref<3x128x128xf32, #tpu.memory_space<vmem>>, vector<1x128x128xf32>
    %33 = vector.shape_cast %32 : vector<1x128x128xf32> to vector<128x128xf32>
    %cst_23 = arith.constant dense<0.000000e+00> : vector<16x128xf32>
    %34 = tpu.matmul %31, %33, %cst_23 {dimension_numbers = #tpu.dot_dimension_numbers<[1], [0], [0], [1], [0, 0, 1, 1], [], []>} : vector<16x128xf32>, vector<128x128xf32>, vector<16x128xf32> -> vector<16x128xf32>
    %35 = arith.addf %30, %34 : vector<16x128xf32>
    %c0_24 = arith.constant 0 : index
    %c0_25 = arith.constant 0 : index
    %36 = vector.load %arg7[%c0_24, %c0_25] : memref<1x128xf32, #tpu.memory_space<vmem>>, vector<1x128xf32>
    %37 = vector.broadcast %36 : vector<1x128xf32> to vector<16x128xf32>
    %38 = arith.addf %35, %37 : vector<16x128xf32>
    %39 = arith.addf %38, %14 : vector<16x128xf32>
    %cst_26 = arith.constant 0.000000e+00 : f32
    %40 = vector.broadcast %cst_26 : f32 to vector<16x128xf32>
    %41 = arith.maximumf %39, %40 : vector<16x128xf32>
    %c0_27 = arith.constant 0 : index
    %c0_28 = arith.constant 0 : index
    %c0_29 = arith.constant 0 : index
    %42 = vector.load %arg8[%c0_27, %c0_28, %c0_29] : memref<1x16x128xf32, #tpu.memory_space<vmem>>, vector<1x16x128xf32>
    %43 = vector.shape_cast %42 : vector<1x16x128xf32> to vector<16x128xf32>
    %44 = vector.shape_cast %41 : vector<16x128xf32> to vector<1x16x128xf32>
    tpu.vector_store %arg8[%c0_27, %c0_28, %c0_29], %44 {strides = array<i32>} : memref<1x16x128xf32, #tpu.memory_space<vmem>>, vector<1x16x128xf32>,
    return
  }
  func.func @transform_0(%arg0: i32) -> (i32, i32, i32) {
    %c0_i32 = arith.constant 0 : i32
    %c0_i32_0 = arith.constant 0 : i32
    %c0_i32_1 = arith.constant 0 : i32
    return %arg0, %c0_i32, %c0_i32_0 : i32, i32, i32
  }
  func.func @transform_1(%arg0: i32) -> (i32, i32) {
    %c0_i32 = arith.constant 0 : i32
    %c0_i32_0 = arith.constant 0 : i32
    %c0_i32_1 = arith.constant 0 : i32
    return %c0_i32, %c0_i32_0 : i32, i32
  }
  func.func @transform_2(%arg0: i32) -> (i32, i32) {
    %c0_i32 = arith.constant 0 : i32
    %c0_i32_0 = arith.constant 0 : i32
    %c0_i32_1 = arith.constant 0 : i32
    return %c0_i32, %c0_i32_0 : i32, i32
  }
  func.func @transform_3(%arg0: i32) -> (i32, i32) {
    %c0_i32 = arith.constant 0 : i32
    %c0_i32_0 = arith.constant 0 : i32
    %c0_i32_1 = arith.constant 0 : i32
    return %c0_i32, %c0_i32_0 : i32, i32
  }
  func.func @transform_4(%arg0: i32) -> (i32, i32) {
    %c0_i32 = arith.constant 0 : i32
    %c0_i32_0 = arith.constant 0 : i32
    %c0_i32_1 = arith.constant 0 : i32
    return %c0_i32, %c0_i32_0 : i32, i32
  }
  func.func @transform_5(%arg0: i32) -> (i32, i32, i32) {
    %c0_i32 = arith.constant 0 : i32
    %c0_i32_0 = arith.constant 0 : i32
    %c0_i32_1 = arith.constant 0 : i32
    %c0_i32_2 = arith.constant 0 : i32
    return %c0_i32, %c0_i32_0, %c0_i32_1 : i32, i32, i32
  }
  func.func @transform_6(%arg0: i32) -> (i32, i32) {
    %c0_i32 = arith.constant 0 : i32
    %c0_i32_0 = arith.constant 0 : i32
    %c0_i32_1 = arith.constant 0 : i32
    return %c0_i32, %c0_i32_0 : i32, i32
  }
  func.func @transform_7(%arg0: i32) -> (i32, i32, i32) {
    %c0_i32 = arith.constant 0 : i32
    %c0_i32_0 = arith.constant 0 : i32
    %c0_i32_1 = arith.constant 0 : i32
    return %arg0, %c0_i32, %c0_i32_0 : i32, i32, i32
  }
}

</mosaic_0001>

<llo_original>
// kernel: tpu_custom_call.1
$region0: #{tpu_custom_call.1}
  #allocation0 [shape = 'u32[]', space=smem, size = 0x4, offset = 0x4, fixed_abs, tag = 'smem constant byte address 0x4 - core index']
  #allocation1 [shape = 'u32[144,128]{1,0:T(1,128)}', space=vmem, size = 0x12000, scoped, tag = 'internal scratch']
  %s0 = inlined_call_operand.vmem [shape: f32[2,18,64], index: 0, kind: input, shape index: {}]
  %s1 = inlined_call_operand.vmem [shape: f32[64,128], index: 1, kind: input, shape index: {}]
  %s2 = inlined_call_operand.hbm [shape: f32[64,256], index: 2, kind: input, shape index: {}]
  %s3 = inlined_call_operand.hbm [shape: f32[64,128], index: 3, kind: input, shape index: {}]
  %s4 = inlined_call_operand.vmem [shape: f32[1,128], index: 4, kind: input, shape index: {}]
  %s5 = inlined_call_operand.hbm [shape: f32[3,128,128], index: 5, kind: input, shape index: {}]
  %s6 = inlined_call_operand.vmem [shape: f32[1,128], index: 6, kind: input, shape index: {}]
  %s7 = inlined_call_operand.hbm [shape: f32[2,16,128], index: 7, kind: output, shape index: {}]
  %s8 = sld [smem:[#allocation0]]
  $region73: #{tpu_custom_call.1} parent=0
    _
  %s10 = ssub.s32 1, %s8
  %s11 = scalar_select 0, %s10, %s8
  $region1: #{tpu_custom_call.1} parent=0
    #allocation2 [shape = 'u8[65536]{0}', space=vmem, size = 0x10000, scoped, tag = 'input window, operand 2, single buffered']
    #allocation3 [shape = 's32[2]{0}', space=sflag, size = 0x8, scoped, tag = 'scoped memory for tpu_custom_call.1']
    #allocation4 [shape = 's32[2]{0}', space=sflag, size = 0x8, scoped, tag = 'scoped memory for tpu_custom_call.1']
    #allocation5 [shape = 'u8[32768]{0}', space=vmem, size = 0x8000, scoped, tag = 'input window, operand 3, single buffered']
    #allocation6 [shape = 's32[1]{0}', space=sflag, size = 0x4, scoped, tag = 'scoped memory for tpu_custom_call.1']
    #allocation7 [shape = 'u8[196608]{0}', space=vmem, size = 0x30000, scoped, tag = 'input window, operand 5, single buffered']
    #allocation8 [shape = 'u8[16384]{0}', space=vmem, size = 0x4000, scoped, tag = 'output window, operand 0']
    %12 = vsyncpa [#allocation3], 0
    %13 = vsyncpa [#allocation6], 0
    %14 = vsyncpa [#allocation4], 0
    %s15 = scalar_lea.sflag [#allocation4], 1
    %16 = vsyncpa %s15, 0
    loop: start=0, step=1, limit=4
    $region2: #{tpu_custom_call.1} parent=1 // loop_pre_header
      _
    $region3: #{tpu_custom_call.1} parent=1 // loop_header
      %s18 = sphi 0, %s22
      %p19 = scmp.ge.s32.totalorder %s18, 4
      %s28 = sphi 0, %s30
      %s31 = sphi 0, %s28
      %s32 = sphi 0, %s31
      %s48 = sphi 0, %s32
      %s52 = sphi 0, %s52
      %s54 = sphi 0, %s52
      %s55 = sphi 0, %s54
      %s69 = sphi 0, %s55
      %s73 = sphi 0, %s73
      %s75 = sphi 0, %s73
      %s76 = sphi 0, %s75
      %s90 = sphi 0, %s76
      %s94 = sphi 0, %s94
      %s96 = sphi 0, %s94
      %s97 = sphi 0, %s96
      %s111 = sphi 0, %s97
      %s115 = sphi 0, %s115
      %s117 = sphi 0, %s115
      %s118 = sphi 0, %s117
      %s132 = sphi 0, %s118
      %s136 = sphi 0, %s136
      %s138 = sphi 0, %s136
      %s139 = sphi 0, %s138
      %s153 = sphi 0, %s139
      %s157 = sphi 0, %s157
      %s159 = sphi 0, %s157
      %s160 = sphi 0, %s159
      %s174 = sphi 0, %s160
      %s180 = sphi 0, %s182
      %s183 = sphi 0, %s180
      %s184 = sphi 0, %s183
      %s200 = sphi 0, %s184
    $region4: #{tpu_custom_call.1} parent=1 // loop_header_branch
      %21 = sbr.rel (%p19) target = $region8
    $region5: #{tpu_custom_call.1} parent=1 // loop_body
      %s23 = ssub.s32 %s18, 1
      %s24 = ssub.s32 %s18, 2
      %s25 = sadd.s32 %s18, 1
      %s26 = ssub.s32 %s18, %s25
      %p27 = scmp.eq.s32.totalorder %s26, 0
      %s29 = sadd.s32 %s28, 1
      %s30 = scalar_select %p27, %s28, %s29
      %p33 = pneg %p27
      %p34 = scmp.eq.s32.totalorder %s18, 1
      %p35 = por %p33, %p34
      %p36 = scmp.ne.s32.totalorder %s28, %s31
      %p37 = scmp.eq.s32.totalorder %s18, 0
      %p38 = por %p36, %p37
      %p39 = scmp.ne.s32.totalorder %s28, %s31
      %p40 = scmp.eq.s32.totalorder %s23, 1
      %p41 = por %p39, %p40
      %p42 = scmp.ne.s32.totalorder %s31, %s32
      %p43 = scmp.eq.s32.totalorder %s23, 0
      %p44 = por %p42, %p43
      %p45 = scmp.ne.s32.totalorder %s31, %s32
      %p46 = scmp.eq.s32.totalorder %s24, 1
      %p47 = por %p45, %p46
      %p49 = scmp.ne.s32.totalorder %s32, %s48
      %p50 = scmp.eq.s32.totalorder %s24, 0
      %p51 = por %p49, %p50
      %s53 = sadd.s32 %s52, 1
      %p56 = scmp.eq.s32.totalorder %s18, 1
      %p57 = scmp.ne.s32.totalorder %s52, %s54
      %p58 = scmp.eq.s32.totalorder %s18, 0
      %p59 = por %p57, %p58
      %p60 = scmp.ne.s32.totalorder %s52, %s54
      %p61 = scmp.eq.s32.totalorder %s23, 1
      %p62 = por %p60, %p61
      %p63 = scmp.ne.s32.totalorder %s54, %s55
      %p64 = scmp.eq.s32.totalorder %s23, 0
      %p65 = por %p63, %p64
      %p66 = scmp.ne.s32.totalorder %s54, %s55
      %p67 = scmp.eq.s32.totalorder %s24, 1
      %p68 = por %p66, %p67
      %p70 = scmp.ne.s32.totalorder %s55, %s69
      %p71 = scmp.eq.s32.totalorder %s24, 0
      %p72 = por %p70, %p71
      %s74 = sadd.s32 %s73, 1
      %p77 = scmp.eq.s32.totalorder %s18, 1
      %p78 = scmp.ne.s32.totalorder %s73, %s75
      %p79 = scmp.eq.s32.totalorder %s18, 0
      %p80 = por %p78, %p79
      %p81 = scmp.ne.s32.totalorder %s73, %s75
      %p82 = scmp.eq.s32.totalorder %s23, 1
      %p83 = por %p81, %p82
      %p84 = scmp.ne.s32.totalorder %s75, %s76
      %p85 = scmp.eq.s32.totalorder %s23, 0
      %p86 = por %p84, %p85
      %p87 = scmp.ne.s32.totalorder %s75, %s76
      %p88 = scmp.eq.s32.totalorder %s24, 1
      %p89 = por %p87, %p88
      %p91 = scmp.ne.s32.totalorder %s76, %s90
      %p92 = scmp.eq.s32.totalorder %s24, 0
      %p93 = por %p91, %p92
      %s95 = sadd.s32 %s94, 1
      %p98 = scmp.eq.s32.totalorder %s18, 1
      %p99 = scmp.ne.s32.totalorder %s94, %s96
      %p100 = scmp.eq.s32.totalorder %s18, 0
      %p101 = por %p99, %p100
      %p102 = scmp.ne.s32.totalorder %s94, %s96
      %p103 = scmp.eq.s32.totalorder %s23, 1
      %p104 = por %p102, %p103
      %p105 = scmp.ne.s32.totalorder %s96, %s97
      %p106 = scmp.eq.s32.totalorder %s23, 0
      %p107 = por %p105, %p106
      %p108 = scmp.ne.s32.totalorder %s96, %s97
      %p109 = scmp.eq.s32.totalorder %s24, 1
      %p110 = por %p108, %p109
      %p112 = scmp.ne.s32.totalorder %s97, %s111
      %p113 = scmp.eq.s32.totalorder %s24, 0
      %p114 = por %p112, %p113
      %s116 = sadd.s32 %s115, 1
      %p119 = scmp.eq.s32.totalorder %s18, 1
      %p120 = scmp.ne.s32.totalorder %s115, %s117
      %p121 = scmp.eq.s32.totalorder %s18, 0
      %p122 = por %p120, %p121
      %p123 = scmp.ne.s32.totalorder %s115, %s117
      %p124 = scmp.eq.s32.totalorder %s23, 1
      %p125 = por %p123, %p124
      %p126 = scmp.ne.s32.totalorder %s117, %s118
      %p127 = scmp.eq.s32.totalorder %s23, 0
      %p128 = por %p126, %p127
      %p129 = scmp.ne.s32.totalorder %s117, %s118
      %p130 = scmp.eq.s32.totalorder %s24, 1
      %p131 = por %p129, %p130
      %p133 = scmp.ne.s32.totalorder %s118, %s132
      %p134 = scmp.eq.s32.totalorder %s24, 0
      %p135 = por %p133, %p134
      %s137 = sadd.s32 %s136, 1
      %p140 = scmp.eq.s32.totalorder %s18, 1
      %p141 = scmp.ne.s32.totalorder %s136, %s138
      %p142 = scmp.eq.s32.totalorder %s18, 0
      %p143 = por %p141, %p142
      %p144 = scmp.ne.s32.totalorder %s136, %s138
      %p145 = scmp.eq.s32.totalorder %s23, 1
      %p146 = por %p144, %p145
      %p147 = scmp.ne.s32.totalorder %s138, %s139
      %p148 = scmp.eq.s32.totalorder %s23, 0
      %p149 = por %p147, %p148
      %p150 = scmp.ne.s32.totalorder %s138, %s139
      %p151 = scmp.eq.s32.totalorder %s24, 1
      %p152 = por %p150, %p151
      %p154 = scmp.ne.s32.totalorder %s139, %s153
      %p155 = scmp.eq.s32.totalorder %s24, 0
      %p156 = por %p154, %p155
      %s158 = sadd.s32 %s157, 1
      %p161 = scmp.eq.s32.totalorder %s18, 1
      %p162 = scmp.ne.s32.totalorder %s157, %s159
      %p163 = scmp.eq.s32.totalorder %s18, 0
      %p164 = por %p162, %p163
      %p165 = scmp.ne.s32.totalorder %s157, %s159
      %p166 = scmp.eq.s32.totalorder %s23, 1
      %p167 = por %p165, %p166
      %p168 = scmp.ne.s32.totalorder %s159, %s160
      %p169 = scmp.eq.s32.totalorder %s23, 0
      %p170 = por %p168, %p169
      %p171 = scmp.ne.s32.totalorder %s159, %s160
      %p172 = scmp.eq.s32.totalorder %s24, 1
      %p173 = por %p171, %p172
      %p175 = scmp.ne.s32.totalorder %s160, %s174
      %p176 = scmp.eq.s32.totalorder %s24, 0
      %p177 = por %p175, %p176
      %s178 = ssub.s32 %s18, %s25
      %p179 = scmp.eq.s32.totalorder %s178, 0
      %s181 = sadd.s32 %s180, 1
      %s182 = scalar_select %p179, %s180, %s181
      %p185 = pneg %p179
      %p186 = scmp.eq.s32.totalorder %s18, 1
      %p187 = por %p185, %p186
      %p188 = scmp.ne.s32.totalorder %s180, %s183
      %p189 = scmp.eq.s32.totalorder %s18, 0
      %p190 = por %p188, %p189
      %p191 = scmp.ne.s32.totalorder %s180, %s183
      %p192 = scmp.eq.s32.totalorder %s23, 1
      %p193 = por %p191, %p192
      %p194 = scmp.ne.s32.totalorder %s183, %s184
      %p195 = scmp.eq.s32.totalorder %s23, 0
      %p196 = por %p194, %p195
      %p197 = scmp.ne.s32.totalorder %s183, %s184
      %p198 = scmp.eq.s32.totalorder %s24, 1
      %p199 = por %p197, %p198
      %p201 = scmp.ne.s32.totalorder %s184, %s200
      %p202 = scmp.eq.s32.totalorder %s24, 0
      %p203 = por %p201, %p202
      %p204 = scmp.le.s32.totalorder 1, %s18
      %p205 = scmp.lt.s32.totalorder %s18, 3
      %p206 = pnand %p204, %p205
      %p207 = pneg %p206
      // Predicated region
      $region9: #{tpu_custom_call.1} parent=5 // pred_check
        _
      $region10: #{tpu_custom_call.1} parent=5 // pred_check_branch
        %209 = sbr.rel (%p206) target = $region12
      $region11: #{tpu_custom_call.1} parent=5 // pred_region
        %s210 = ssub.s32 %s18, 1
        // Predicated region
        $region13: #{tpu_custom_call.1} parent=11 // pred_check
          %p211 = pneg %p65
        $region14: #{tpu_custom_call.1} parent=11 // pred_check_branch
          %213 = sbr.rel (%p211) target = $region16
        $region15: #{tpu_custom_call.1} parent=11 // pred_region
          _
        $region16: #{tpu_custom_call.1} parent=11 // pred_fallthru
          _
        // Predicated region
        $region17: #{tpu_custom_call.1} parent=11 // pred_check
          %p214 = pneg %p86
        $region18: #{tpu_custom_call.1} parent=11 // pred_check_branch
          %216 = sbr.rel (%p214) target = $region20
        $region19: #{tpu_custom_call.1} parent=11 // pred_region
          %s218 = ssub.s32 2048, 2048
          %219 = vsyncadd [#allocation3], %s218
          %s220 = sshll.u32 [#allocation2], 4
          %s221 = int_to_ptr.vmem [resolvable:$true] %s220
          %226 = dma.hbm_to_vmem [thread:$0]  %s2, 2048, %s221, [#allocation3], 256, 256, 16
        $region20: #{tpu_custom_call.1} parent=11 // pred_fallthru
          _
        // Predicated region
        $region21: #{tpu_custom_call.1} parent=11 // pred_check
          %p227 = pneg %p107
        $region22: #{tpu_custom_call.1} parent=11 // pred_check_branch
          %229 = sbr.rel (%p227) target = $region24
        $region23: #{tpu_custom_call.1} parent=11 // pred_region
          %s231 = ssub.s32 1024, 1024
          %232 = vsyncadd [#allocation6], %s231
          %s233 = sshll.u32 [#allocation5], 4
          %s234 = int_to_ptr.vmem [resolvable:$true] %s233
          %239 = dma.hbm_to_vmem [thread:$0]  %s3, 1024, %s234, [#allocation6], 128, 128, 8
        $region24: #{tpu_custom_call.1} parent=11 // pred_fallthru
          _
        // Predicated region
        $region25: #{tpu_custom_call.1} parent=11 // pred_check
          %p240 = pneg %p128
        $region26: #{tpu_custom_call.1} parent=11 // pred_check_branch
          %242 = sbr.rel (%p240) target = $region28
        $region27: #{tpu_custom_call.1} parent=11 // pred_region
          _
        $region28: #{tpu_custom_call.1} parent=11 // pred_fallthru
          _
        // Predicated region
        $region29: #{tpu_custom_call.1} parent=11 // pred_check
          %p243 = pneg %p149
        $region30: #{tpu_custom_call.1} parent=11 // pred_check_branch
          %245 = sbr.rel (%p243) target = $region32
        $region31: #{tpu_custom_call.1} parent=11 // pred_region
          %s247 = ssub.s32 6144, 6144
          %248 = vsyncadd [#allocation6], %s247
          %s249 = sshll.u32 [#allocation7], 4
          %s250 = int_to_ptr.vmem [resolvable:$true] %s249
          %255 = dma.hbm_to_vmem [thread:$0]  %s5, 6144, %s250, [#allocation6], 128, 128, 8
        $region32: #{tpu_custom_call.1} parent=11 // pred_fallthru
          _
        // Predicated region
        $region33: #{tpu_custom_call.1} parent=11 // pred_check
          %p256 = pneg %p170
        $region34: #{tpu_custom_call.1} parent=11 // pred_check_branch
          %258 = sbr.rel (%p256) target = $region36
        $region35: #{tpu_custom_call.1} parent=11 // pred_region
          _
        $region36: #{tpu_custom_call.1} parent=11 // pred_fallthru
          _
      $region12: #{tpu_custom_call.1} parent=5 // pred_fallthru
        _
      %p259 = scmp.lt.s32.totalorder %s18, 2
      // Predicated region
      $region37: #{tpu_custom_call.1} parent=5 // pred_check
        %p260 = pneg %p259
      $region38: #{tpu_custom_call.1} parent=5 // pred_check_branch
        %262 = sbr.rel (%p260) target = $region40
      $region39: #{tpu_custom_call.1} parent=5 // pred_region
        // Predicated region
        $region41: #{tpu_custom_call.1} parent=39 // pred_check
          %p263 = pneg %p38
        $region42: #{tpu_custom_call.1} parent=39 // pred_check_branch
          %265 = sbr.rel (%p263) target = $region44
        $region43: #{tpu_custom_call.1} parent=39 // pred_region
          %p266 = scmp.lt.s32.totalorder %s18, 1
          %s267 = scalar_select %p266, %s18, 1
          %s268 = smul.addr %s267, 3
          %s269 = smul.addr %s268, 8
          %s270 = scalar_lea.vmem %s0, %s269
        $region44: #{tpu_custom_call.1} parent=39 // pred_fallthru
          _
      $region40: #{tpu_custom_call.1} parent=5 // pred_fallthru
        _
      %p271 = scmp.le.s32.totalorder 1, %s18
      %p272 = scmp.lt.s32.totalorder %s18, 3
      %p273 = pnand %p271, %p272
      %p274 = pneg %p273
      // Predicated region
      $region45: #{tpu_custom_call.1} parent=5 // pred_check
        _
      $region46: #{tpu_custom_call.1} parent=5 // pred_check_branch
        %276 = sbr.rel (%p273) target = $region48
      $region47: #{tpu_custom_call.1} parent=5 // pred_region
        %s277 = ssub.s32 %s18, 1
        // Predicated region
        $region49: #{tpu_custom_call.1} parent=47 // pred_check
          %p278 = pneg %p86
        $region50: #{tpu_custom_call.1} parent=47 // pred_check_branch
          %280 = sbr.rel (%p278) target = $region52
        $region51: #{tpu_custom_call.1} parent=47 // pred_region
          %281 = dma.done [#allocation3], 2048
        $region52: #{tpu_custom_call.1} parent=47 // pred_fallthru
          _
        // Predicated region
        $region53: #{tpu_custom_call.1} parent=47 // pred_check
          %p282 = pneg %p107
        $region54: #{tpu_custom_call.1} parent=47 // pred_check_branch
          %284 = sbr.rel (%p282) target = $region56
        $region55: #{tpu_custom_call.1} parent=47 // pred_region
          %285 = dma.done [#allocation6], 1024
        $region56: #{tpu_custom_call.1} parent=47 // pred_fallthru
          _
        // Predicated region
        $region57: #{tpu_custom_call.1} parent=47 // pred_check
          %p286 = pneg %p149
        $region58: #{tpu_custom_call.1} parent=47 // pred_check_branch
          %288 = sbr.rel (%p286) target = $region60
        $region59: #{tpu_custom_call.1} parent=47 // pred_region
          %289 = dma.done [#allocation6], 6144
        $region60: #{tpu_custom_call.1} parent=47 // pred_fallthru
          _
        %p290 = scmp.lt.s32.totalorder %s23, 1
        %s291 = scalar_select %p290, %s23, 1
        %s292 = smul.addr %s291, 3
        %s293 = smul.addr %s292, 8
        %s294 = scalar_lea.vmem %s0, %s293
        %p295 = pneg %p44
        %p296 = pneg %p41
        %p297 = pneg %p65
        %p298 = pneg %p62
        %p299 = pneg %p86
        %p300 = pneg %p83
        %p301 = pneg %p107
        %p302 = pneg %p104
        %p303 = pneg %p128
        %p304 = pneg %p125
        %p305 = pneg %p149
        %p306 = pneg %p146
        %p307 = pneg %p170
        %p308 = pneg %p167
        %p309 = pneg %p196
        %p310 = pneg %p193
        %s311 = sand.u32 %s183, 1
        %s312 = scalar_lea.sflag [#allocation4], %s311
        %s313 = sand.u32 %s183, 1
        %s314 = smul.addr %s313, 16
        %s315 = scalar_lea.vmem [#allocation8], %s314
        %p316 = scmp.lt.s32.totalorder %s23, 1
        %s317 = scalar_select %p316, %s23, 1
        %s318 = smul.addr %s317, 3
        %s319 = smul.addr %s318, 8
        %s320 = scalar_lea.vmem %s0, %s319
        %v321 = vld [vmem:[%s320] sm:$0xff]
        %v322 = vld [vmem:[%s320 + $0x8] sm:$0xff]
        %v323 = vld [vmem:[%s320 + $0x10] sm:$0x3]
        %v324 = vld [vmem:[%s1] sm:$0xff]
        %v325 = vld [vmem:[%s1 + $0x8] sm:$0xff]
        %v326 = vld [vmem:[%s1 + $0x10] sm:$0xff]
        %v327 = vld [vmem:[%s1 + $0x18] sm:$0xff]
        %v328 = vld [vmem:[%s1 + $0x20] sm:$0xff]
        %v329 = vld [vmem:[%s1 + $0x28] sm:$0xff]
        %v330 = vld [vmem:[%s1 + $0x30] sm:$0xff]
        %v331 = vld [vmem:[%s1 + $0x38] sm:$0xff]
        %v332 = vld [vmem:[#allocation5] sm:$0xff]
        %v333 = vld [vmem:[#allocation5 + $0x8] sm:$0xff]
        %v334 = vld [vmem:[#allocation5 + $0x10] sm:$0xff]
        %v335 = vld [vmem:[#allocation5 + $0x18] sm:$0xff]
        %v336 = vld [vmem:[#allocation5 + $0x20] sm:$0xff]
        %v337 = vld [vmem:[#allocation5 + $0x28] sm:$0xff]
        %v338 = vld [vmem:[#allocation5 + $0x30] sm:$0xff]
        %v339 = vld [vmem:[#allocation5 + $0x38] sm:$0xff]
        %vm343 = vcmask 1045504
        %v344 = vrot.slane %v321, 2
        %v345 = vrot.slane %v322, 2
        %v346 = vsel %vm343, %v344, %v345
        %v347 = vrot.slane %v323, 2
        %v348 = vsel %vm343, %v345, %v347
        %vm349 = vcmask 523264
        %v350 = vsel %vm349, %v346, 0
        %v352 = vsel %vm349, %v348, 0
        %354 = vmatprep.subr.mxu0 0.0
        %355 = vmatpush1.msra.mxu0 0.0
        %356 = vmatprep.subr.mxu0 0.0
        %357 = vmatpush1.msra.mxu0 0.0
        %358 = vmatprep.subr.mxu0 0.0
        %359 = vmatpush1.msra.mxu0 0.0
        %360 = vmatprep.subr.mxu0 0.0
        %361 = vmatpush1.msra.mxu0 0.0
        %362 = vmatprep.subr.mxu0 0.0
        %363 = vmatpush1.msra.mxu0 0.0
        %364 = vmatprep.subr.mxu0 0.0
        %365 = vmatpush1.msra.mxu0 0.0
        %366 = vmatprep.subr.mxu0 0.0
        %367 = vmatpush1.msra.mxu0 0.0
        %368 = vmatprep.subr.mxu0 0.0
        %369 = vmatpush1.msra.mxu0 0.0
        %370 = vmatprep.subr.mxu0 0.0
        %371 = vmatpush1.msra.mxu0 %v339
        %372 = vmatprep.subr.mxu0 0.0
        %373 = vmatpush1.msra.mxu0 %v338
        %374 = vmatprep.subr.mxu0 0.0
        %375 = vmatpush1.msra.mxu0 %v337
        %376 = vmatprep.subr.mxu0 0.0
        %377 = vmatpush1.msra.mxu0 %v336
        %378 = vmatprep.subr.mxu0 0.0
        %379 = vmatpush1.msra.mxu0 %v335
        %380 = vmatprep.subr.mxu0 0.0
        %381 = vmatpush1.msra.mxu0 %v334
        %382 = vmatprep.subr.mxu0 0.0
        %383 = vmatpush1.msra.mxu0 %v333
        %384 = vmatprep.subr.mxu0 0.0
        %385 = vmatpush1.msra.mxu0 %v332
        %386 = vmatprep.subr.mxu0 0.0
        %387 = vmatpush2.msra.mxu0 0.0
        %388 = vmatprep.subr.mxu0 0.0
        %389 = vmatpush2.msra.mxu0 0.0
        %390 = vmatprep.subr.mxu0 0.0
        %391 = vmatpush2.msra.mxu0 0.0
        %392 = vmatprep.subr.mxu0 0.0
        %393 = vmatpush2.msra.mxu0 0.0
        %394 = vmatprep.subr.mxu0 0.0
        %395 = vmatpush2.msra.mxu0 0.0
        %396 = vmatprep.subr.mxu0 0.0
        %397 = vmatpush2.msra.mxu0 0.0
        %398 = vmatprep.subr.mxu0 0.0
        %399 = vmatpush2.msra.mxu0 0.0
        %400 = vmatprep.subr.mxu0 0.0
        %401 = vmatpush2.msra.mxu0 0.0
        %402 = vmatprep.subr.mxu0 0.0
        %403 = vmatpush2.msra.mxu0 0.0
        %404 = vmatprep.subr.mxu0 0.0
        %405 = vmatpush2.msra.mxu0 0.0
        %406 = vmatprep.subr.mxu0 0.0
        %407 = vmatpush2.msra.mxu0 0.0
        %408 = vmatprep.subr.mxu0 0.0
        %409 = vmatpush2.msra.mxu0 0.0
        %410 = vmatprep.subr.mxu0 0.0
        %411 = vmatpush2.msra.mxu0 0.0
        %412 = vmatprep.subr.mxu0 0.0
        %413 = vmatpush2.msra.mxu0 0.0
        %414 = vmatprep.subr.mxu0 0.0
        %415 = vmatpush2.msra.mxu0 0.0
        %416 = vmatprep.subr.mxu0 0.0
        %417 = vmatpush2.msra.mxu0 0.0
        %418 = vmatprep.mubr.f32.mxu0 0.0
        %419 = vmatmul.mubr.f32.gmra.mxu0 %v350
        %v420 = vpop.f32.mrf.mxu0
        %v421 = vadd.f32 0.0, %v420
        %v422 = vpop.f32.mrf.mxu0
        %423 = vmatprep.mubr.f32.mxu0 0.0
        %424 = vmatmul.mubr.f32.gmra.mxu0 %v352
        %v425 = vpop.f32.mrf.mxu0
        %v426 = vadd.f32 0.0, %v425
        %v427 = vpop.f32.mrf.mxu0
        %428 = vdwg.mxu0
        %v429 = vsel %vm349, %v321, 0
        %v431 = vsel %vm349, %v322, 0
        %433 = vmatprep.subr.mxu0 0.0
        %434 = vmatpush1.msra.mxu0 0.0
        %435 = vmatprep.subr.mxu0 0.0
        %436 = vmatpush1.msra.mxu0 0.0
        %437 = vmatprep.subr.mxu0 0.0
        %438 = vmatpush1.msra.mxu0 0.0
        %439 = vmatprep.subr.mxu0 0.0
        %440 = vmatpush1.msra.mxu0 0.0
        %441 = vmatprep.subr.mxu0 0.0
        %442 = vmatpush1.msra.mxu0 0.0
        %443 = vmatprep.subr.mxu0 0.0
        %444 = vmatpush1.msra.mxu0 0.0
        %445 = vmatprep.subr.mxu0 0.0
        %446 = vmatpush1.msra.mxu0 0.0
        %447 = vmatprep.subr.mxu0 0.0
        %448 = vmatpush1.msra.mxu0 0.0
        %449 = vmatprep.subr.mxu0 0.0
        %450 = vmatpush1.msra.mxu0 %v331
        %451 = vmatprep.subr.mxu0 0.0
        %452 = vmatpush1.msra.mxu0 %v330
        %453 = vmatprep.subr.mxu0 0.0
        %454 = vmatpush1.msra.mxu0 %v329
        %455 = vmatprep.subr.mxu0 0.0
        %456 = vmatpush1.msra.mxu0 %v328
        %457 = vmatprep.subr.mxu0 0.0
        %458 = vmatpush1.msra.mxu0 %v327
        %459 = vmatprep.subr.mxu0 0.0
        %460 = vmatpush1.msra.mxu0 %v326
        %461 = vmatprep.subr.mxu0 0.0
        %462 = vmatpush1.msra.mxu0 %v325
        %463 = vmatprep.subr.mxu0 0.0
        %464 = vmatpush1.msra.mxu0 %v324
        %465 = vmatprep.subr.mxu0 0.0
        %466 = vmatpush2.msra.mxu0 0.0
        %467 = vmatprep.subr.mxu0 0.0
        %468 = vmatpush2.msra.mxu0 0.0
        %469 = vmatprep.subr.mxu0 0.0
        %470 = vmatpush2.msra.mxu0 0.0
        %471 = vmatprep.subr.mxu0 0.0
        %472 = vmatpush2.msra.mxu0 0.0
        %473 = vmatprep.subr.mxu0 0.0
        %474 = vmatpush2.msra.mxu0 0.0
        %475 = vmatprep.subr.mxu0 0.0
        %476 = vmatpush2.msra.mxu0 0.0
        %477 = vmatprep.subr.mxu0 0.0
        %478 = vmatpush2.msra.mxu0 0.0
        %479 = vmatprep.subr.mxu0 0.0
        %480 = vmatpush2.msra.mxu0 0.0
        %481 = vmatprep.subr.mxu0 0.0
        %482 = vmatpush2.msra.mxu0 0.0
        %483 = vmatprep.subr.mxu0 0.0
        %484 = vmatpush2.msra.mxu0 0.0
        %485 = vmatprep.subr.mxu0 0.0
        %486 = vmatpush2.msra.mxu0 0.0
        %487 = vmatprep.subr.mxu0 0.0
        %488 = vmatpush2.msra.mxu0 0.0
        %489 = vmatprep.subr.mxu0 0.0
        %490 = vmatpush2.msra.mxu0 0.0
        %491 = vmatprep.subr.mxu0 0.0
        %492 = vmatpush2.msra.mxu0 0.0
        %493 = vmatprep.subr.mxu0 0.0
        %494 = vmatpush2.msra.mxu0 0.0
        %495 = vmatprep.subr.mxu0 0.0
        %496 = vmatpush2.msra.mxu0 0.0
        %497 = vmatprep.mubr.f32.mxu0 0.0
        %498 = vmatmul.mubr.f32.gmra.mxu0 %v429
        %v499 = vpop.f32.mrf.mxu0
        %v500 = vadd.f32 %v421, %v499
        %v501 = vpop.f32.mrf.mxu0
        %502 = vmatprep.mubr.f32.mxu0 0.0
        %503 = vmatmul.mubr.f32.gmra.mxu0 %v431
        %v504 = vpop.f32.mrf.mxu0
        %v505 = vadd.f32 %v426, %v504
        %v506 = vpop.f32.mrf.mxu0
        %507 = vdwg.mxu0
        %v508 = vld [vmem:[#allocation2] sm:$0xff]
        %v509 = vld [vmem:[#allocation2 + $0x8] sm:$0xff]
        %v510 = vld [vmem:[#allocation2 + $0x10] sm:$0xff]
        %v511 = vld [vmem:[#allocation2 + $0x18] sm:$0xff]
        %v512 = vld [vmem:[#allocation2 + $0x20] sm:$0xff]
        %v513 = vld [vmem:[#allocation2 + $0x28] sm:$0xff]
        %v514 = vld [vmem:[#allocation2 + $0x30] sm:$0xff]
        %v515 = vld [vmem:[#allocation2 + $0x38] sm:$0xff]
        %v516 = vld [vmem:[#allocation2 + $0x40] sm:$0xff]
        %v517 = vld [vmem:[#allocation2 + $0x48] sm:$0xff]
        %v518 = vld [vmem:[#allocation2 + $0x50] sm:$0xff]
        %v519 = vld [vmem:[#allocation2 + $0x58] sm:$0xff]
        %v520 = vld [vmem:[#allocation2 + $0x60] sm:$0xff]
        %v521 = vld [vmem:[#allocation2 + $0x68] sm:$0xff]
        %v522 = vld [vmem:[#allocation2 + $0x70] sm:$0xff]
        %v523 = vld [vmem:[#allocation2 + $0x78] sm:$0xff]
        %vm524 = vcmask 1046528
        %v525 = vrot.slane %v321, 1
        %v526 = vrot.slane %v322, 1
        %v527 = vsel %vm524, %v525, %v526
        %v528 = vrot.slane %v323, 1
        %v529 = vsel %vm524, %v526, %v528
        %v530 = vsel %vm349, %v527, 0
        %v532 = vsel %vm349, %v529, 0
        %534 = vmatprep.subr.mxu0 0.0
        %535 = vmatpush1.msra.mxu0 0.0
        %536 = vmatprep.subr.mxu0 0.0
        %537 = vmatpush1.msra.mxu0 0.0
        %538 = vmatprep.subr.mxu0 0.0
        %539 = vmatpush1.msra.mxu0 0.0
        %540 = vmatprep.subr.mxu0 0.0
        %541 = vmatpush1.msra.mxu0 0.0
        %542 = vmatprep.subr.mxu0 0.0
        %543 = vmatpush1.msra.mxu0 0.0
        %544 = vmatprep.subr.mxu0 0.0
        %545 = vmatpush1.msra.mxu0 0.0
        %546 = vmatprep.subr.mxu0 0.0
        %547 = vmatpush1.msra.mxu0 0.0
        %548 = vmatprep.subr.mxu0 0.0
        %549 = vmatpush1.msra.mxu0 0.0
        %550 = vmatprep.subr.mxu0 %v523
        %551 = vmatpush1.msra.mxu0 %v522
        %552 = vmatprep.subr.mxu0 %v521
        %553 = vmatpush1.msra.mxu0 %v520
        %554 = vmatprep.subr.mxu0 %v519
        %555 = vmatpush1.msra.mxu0 %v518
        %556 = vmatprep.subr.mxu0 %v517
        %557 = vmatpush1.msra.mxu0 %v516
        %558 = vmatprep.subr.mxu0 %v515
        %559 = vmatpush1.msra.mxu0 %v514
        %560 = vmatprep.subr.mxu0 %v513
        %561 = vmatpush1.msra.mxu0 %v512
        %562 = vmatprep.subr.mxu0 %v511
        %563 = vmatpush1.msra.mxu0 %v510
        %564 = vmatprep.subr.mxu0 %v509
        %565 = vmatpush1.msra.mxu0 %v508
        %566 = vmatprep.subr.mxu0 0.0
        %567 = vmatpush2.msra.mxu0 0.0
        %568 = vmatprep.subr.mxu0 0.0
        %569 = vmatpush2.msra.mxu0 0.0
        %570 = vmatprep.subr.mxu0 0.0
        %571 = vmatpush2.msra.mxu0 0.0
        %572 = vmatprep.subr.mxu0 0.0
        %573 = vmatpush2.msra.mxu0 0.0
        %574 = vmatprep.subr.mxu0 0.0
        %575 = vmatpush2.msra.mxu0 0.0
        %576 = vmatprep.subr.mxu0 0.0
        %577 = vmatpush2.msra.mxu0 0.0
        %578 = vmatprep.subr.mxu0 0.0
        %579 = vmatpush2.msra.mxu0 0.0
        %580 = vmatprep.subr.mxu0 0.0
        %581 = vmatpush2.msra.mxu0 0.0
        %582 = vmatprep.subr.mxu0 0.0
        %583 = vmatpush2.msra.mxu0 0.0
        %584 = vmatprep.subr.mxu0 0.0
        %585 = vmatpush2.msra.mxu0 0.0
        %586 = vmatprep.subr.mxu0 0.0
        %587 = vmatpush2.msra.mxu0 0.0
        %588 = vmatprep.subr.mxu0 0.0
        %589 = vmatpush2.msra.mxu0 0.0
        %590 = vmatprep.subr.mxu0 0.0
        %591 = vmatpush2.msra.mxu0 0.0
        %592 = vmatprep.subr.mxu0 0.0
        %593 = vmatpush2.msra.mxu0 0.0
        %594 = vmatprep.subr.mxu0 0.0
        %595 = vmatpush2.msra.mxu0 0.0
        %596 = vmatprep.subr.mxu0 0.0
        %597 = vmatpush2.msra.mxu0 0.0
        %598 = vmatprep.mubr.f32.mxu0 0.0
        %599 = vmatmul.mubr.f32.gmra.mxu0 %v530
        %v600 = vpop.f32.mrf.mxu0
        %v601 = vadd.f32 0.0, %v600
        %v602 = vpop.f32.mrf.mxu0
        %v603 = vadd.f32 0.0, %v602
        %604 = vmatprep.mubr.f32.mxu0 0.0
        %605 = vmatmul.mubr.f32.gmra.mxu0 %v532
        %v606 = vpop.f32.mrf.mxu0
        %v607 = vadd.f32 0.0, %v606
        %v608 = vpop.f32.mrf.mxu0
        %v609 = vadd.f32 0.0, %v608
        %610 = vdwg.mxu0
        %v611 = vadd.f32 %v500, %v601
        %v612 = vadd.f32 %v505, %v607
        %v613 = vld [vmem:[%s4] sm:$0x1]
        %v615 = vlaneseq
        %v616 = vshrl.u32 %v615, 7
        %v617 = vsub.s32 0, %v616
        %v618 = vrot.slane %v613, %v617
        %v620 = vadd.f32 %v611, %v618
        %v621 = vadd.f32 %v612, %v618
        %v622 = vmax.f32 %v620, 0.0
        %v623 = vmax.f32 %v621, 0.0
        %vm626 = vcmask 1040384
        %v627 = vrot.slane %v622, 7
        %v628 = vrot.slane %v623, 7
        %v629 = vsel %vm626, %v627, %v628
        %v633 = vsel %vm626, 0.0, %v627
        %v634 = vsel %vm626, %v628, 0.0
        %v635 = vld [vmem:[#allocation7] sm:$0xff]
        %v636 = vld [vmem:[#allocation7 + $0x8] sm:$0xff]
        %v637 = vld [vmem:[#allocation7 + $0x10] sm:$0xff]
        %v638 = vld [vmem:[#allocation7 + $0x18] sm:$0xff]
        %v639 = vld [vmem:[#allocation7 + $0x20] sm:$0xff]
        %v640 = vld [vmem:[#allocation7 + $0x28] sm:$0xff]
        %v641 = vld [vmem:[#allocation7 + $0x30] sm:$0xff]
        %v642 = vld [vmem:[#allocation7 + $0x38] sm:$0xff]
        %v643 = vld [vmem:[#allocation7 + $0x40] sm:$0xff]
        %v644 = vld [vmem:[#allocation7 + $0x48] sm:$0xff]
        %v645 = vld [vmem:[#allocation7 + $0x50] sm:$0xff]
        %v646 = vld [vmem:[#allocation7 + $0x58] sm:$0xff]
        %v647 = vld [vmem:[#allocation7 + $0x60] sm:$0xff]
        %v648 = vld [vmem:[#allocation7 + $0x68] sm:$0xff]
        %v649 = vld [vmem:[#allocation7 + $0x70] sm:$0xff]
        %v650 = vld [vmem:[#allocation7 + $0x78] sm:$0xff]
        %s651 = scalar_lea.vmem [#allocation7], 128
        %v652 = vld [vmem:[%s651] sm:$0xff]
        %v653 = vld [vmem:[%s651 + $0x8] sm:$0xff]
        %v654 = vld [vmem:[%s651 + $0x10] sm:$0xff]
        %v655 = vld [vmem:[%s651 + $0x18] sm:$0xff]
        %v656 = vld [vmem:[%s651 + $0x20] sm:$0xff]
        %v657 = vld [vmem:[%s651 + $0x28] sm:$0xff]
        %v658 = vld [vmem:[%s651 + $0x30] sm:$0xff]
        %v659 = vld [vmem:[%s651 + $0x38] sm:$0xff]
        %v660 = vld [vmem:[%s651 + $0x40] sm:$0xff]
        %v661 = vld [vmem:[%s651 + $0x48] sm:$0xff]
        %v662 = vld [vmem:[%s651 + $0x50] sm:$0xff]
        %v663 = vld [vmem:[%s651 + $0x58] sm:$0xff]
        %v664 = vld [vmem:[%s651 + $0x60] sm:$0xff]
        %v665 = vld [vmem:[%s651 + $0x68] sm:$0xff]
        %v666 = vld [vmem:[%s651 + $0x70] sm:$0xff]
        %v667 = vld [vmem:[%s651 + $0x78] sm:$0xff]
        %v670 = vrot.slane %v633, 1
        %v671 = vrot.slane %v629, 1
        %v672 = vsel %vm524, %v670, %v671
        %v673 = vrot.slane %v634, 1
        %v674 = vsel %vm524, %v671, %v673
        %677 = vmatprep.subr.mxu0 0.0
        %678 = vmatpush1.msra.mxu0 %v667
        %679 = vmatprep.subr.mxu0 0.0
        %680 = vmatpush1.msra.mxu0 %v666
        %681 = vmatprep.subr.mxu0 0.0
        %682 = vmatpush1.msra.mxu0 %v665
        %683 = vmatprep.subr.mxu0 0.0
        %684 = vmatpush1.msra.mxu0 %v664
        %685 = vmatprep.subr.mxu0 0.0
        %686 = vmatpush1.msra.mxu0 %v663
        %687 = vmatprep.subr.mxu0 0.0
        %688 = vmatpush1.msra.mxu0 %v662
        %689 = vmatprep.subr.mxu0 0.0
        %690 = vmatpush1.msra.mxu0 %v661
        %691 = vmatprep.subr.mxu0 0.0
        %692 = vmatpush1.msra.mxu0 %v660
        %693 = vmatprep.subr.mxu0 0.0
        %694 = vmatpush1.msra.mxu0 %v659
        %695 = vmatprep.subr.mxu0 0.0
        %696 = vmatpush1.msra.mxu0 %v658
        %697 = vmatprep.subr.mxu0 0.0
        %698 = vmatpush1.msra.mxu0 %v657
        %699 = vmatprep.subr.mxu0 0.0
        %700 = vmatpush1.msra.mxu0 %v656
        %701 = vmatprep.subr.mxu0 0.0
        %702 = vmatpush1.msra.mxu0 %v655
        %703 = vmatprep.subr.mxu0 0.0
        %704 = vmatpush1.msra.mxu0 %v654
        %705 = vmatprep.subr.mxu0 0.0
        %706 = vmatpush1.msra.mxu0 %v653
        %707 = vmatprep.subr.mxu0 0.0
        %708 = vmatpush1.msra.mxu0 %v652
        %709 = vmatprep.subr.mxu0 0.0
        %710 = vmatpush2.msra.mxu0 0.0
        %711 = vmatprep.subr.mxu0 0.0
        %712 = vmatpush2.msra.mxu0 0.0
        %713 = vmatprep.subr.mxu0 0.0
        %714 = vmatpush2.msra.mxu0 0.0
        %715 = vmatprep.subr.mxu0 0.0
        %716 = vmatpush2.msra.mxu0 0.0
        %717 = vmatprep.subr.mxu0 0.0
        %718 = vmatpush2.msra.mxu0 0.0
        %719 = vmatprep.subr.mxu0 0.0
        %720 = vmatpush2.msra.mxu0 0.0
        %721 = vmatprep.subr.mxu0 0.0
        %722 = vmatpush2.msra.mxu0 0.0
        %723 = vmatprep.subr.mxu0 0.0
        %724 = vmatpush2.msra.mxu0 0.0
        %725 = vmatprep.subr.mxu0 0.0
        %726 = vmatpush2.msra.mxu0 0.0
        %727 = vmatprep.subr.mxu0 0.0
        %728 = vmatpush2.msra.mxu0 0.0
        %729 = vmatprep.subr.mxu0 0.0
        %730 = vmatpush2.msra.mxu0 0.0
        %731 = vmatprep.subr.mxu0 0.0
        %732 = vmatpush2.msra.mxu0 0.0
        %733 = vmatprep.subr.mxu0 0.0
        %734 = vmatpush2.msra.mxu0 0.0
        %735 = vmatprep.subr.mxu0 0.0
        %736 = vmatpush2.msra.mxu0 0.0
        %737 = vmatprep.subr.mxu0 0.0
        %738 = vmatpush2.msra.mxu0 0.0
        %739 = vmatprep.subr.mxu0 0.0
        %740 = vmatpush2.msra.mxu0 0.0
        %741 = vmatprep.mubr.f32.mxu0 0.0
        %742 = vmatmul.mubr.f32.gmra.mxu0 %v672
        %v743 = vpop.f32.mrf.mxu0
        %v744 = vadd.f32 0.0, %v743
        %v745 = vpop.f32.mrf.mxu0
        %746 = vmatprep.mubr.f32.mxu0 0.0
        %747 = vmatmul.mubr.f32.gmra.mxu0 %v674
        %v748 = vpop.f32.mrf.mxu0
        %v749 = vadd.f32 0.0, %v748
        %v750 = vpop.f32.mrf.mxu0
        %751 = vdwg.mxu0
        %752 = vmatprep.subr.mxu0 0.0
        %753 = vmatpush1.msra.mxu0 %v650
        %754 = vmatprep.subr.mxu0 0.0
        %755 = vmatpush1.msra.mxu0 %v649
        %756 = vmatprep.subr.mxu0 0.0
        %757 = vmatpush1.msra.mxu0 %v648
        %758 = vmatprep.subr.mxu0 0.0
        %759 = vmatpush1.msra.mxu0 %v647
        %760 = vmatprep.subr.mxu0 0.0
        %761 = vmatpush1.msra.mxu0 %v646
        %762 = vmatprep.subr.mxu0 0.0
        %763 = vmatpush1.msra.mxu0 %v645
        %764 = vmatprep.subr.mxu0 0.0
        %765 = vmatpush1.msra.mxu0 %v644
        %766 = vmatprep.subr.mxu0 0.0
        %767 = vmatpush1.msra.mxu0 %v643
        %768 = vmatprep.subr.mxu0 0.0
        %769 = vmatpush1.msra.mxu0 %v642
        %770 = vmatprep.subr.mxu0 0.0
        %771 = vmatpush1.msra.mxu0 %v641
        %772 = vmatprep.subr.mxu0 0.0
        %773 = vmatpush1.msra.mxu0 %v640
        %774 = vmatprep.subr.mxu0 0.0
        %775 = vmatpush1.msra.mxu0 %v639
        %776 = vmatprep.subr.mxu0 0.0
        %777 = vmatpush1.msra.mxu0 %v638
        %778 = vmatprep.subr.mxu0 0.0
        %779 = vmatpush1.msra.mxu0 %v637
        %780 = vmatprep.subr.mxu0 0.0
        %781 = vmatpush1.msra.mxu0 %v636
        %782 = vmatprep.subr.mxu0 0.0
        %783 = vmatpush1.msra.mxu0 %v635
        %784 = vmatprep.subr.mxu0 0.0
        %785 = vmatpush2.msra.mxu0 0.0
        %786 = vmatprep.subr.mxu0 0.0
        %787 = vmatpush2.msra.mxu0 0.0
        %788 = vmatprep.subr.mxu0 0.0
        %789 = vmatpush2.msra.mxu0 0.0
        %790 = vmatprep.subr.mxu0 0.0
        %791 = vmatpush2.msra.mxu0 0.0
        %792 = vmatprep.subr.mxu0 0.0
        %793 = vmatpush2.msra.mxu0 0.0
        %794 = vmatprep.subr.mxu0 0.0
        %795 = vmatpush2.msra.mxu0 0.0
        %796 = vmatprep.subr.mxu0 0.0
        %797 = vmatpush2.msra.mxu0 0.0
        %798 = vmatprep.subr.mxu0 0.0
        %799 = vmatpush2.msra.mxu0 0.0
        %800 = vmatprep.subr.mxu0 0.0
        %801 = vmatpush2.msra.mxu0 0.0
        %802 = vmatprep.subr.mxu0 0.0
        %803 = vmatpush2.msra.mxu0 0.0
        %804 = vmatprep.subr.mxu0 0.0
        %805 = vmatpush2.msra.mxu0 0.0
        %806 = vmatprep.subr.mxu0 0.0
        %807 = vmatpush2.msra.mxu0 0.0
        %808 = vmatprep.subr.mxu0 0.0
        %809 = vmatpush2.msra.mxu0 0.0
        %810 = vmatprep.subr.mxu0 0.0
        %811 = vmatpush2.msra.mxu0 0.0
        %812 = vmatprep.subr.mxu0 0.0
        %813 = vmatpush2.msra.mxu0 0.0
        %814 = vmatprep.subr.mxu0 0.0
        %815 = vmatpush2.msra.mxu0 0.0
        %816 = vmatprep.mubr.f32.mxu0 0.0
        %817 = vmatmul.mubr.f32.gmra.mxu0 %v633
        %v818 = vpop.f32.mrf.mxu0
        %v819 = vadd.f32 %v744, %v818
        %v820 = vpop.f32.mrf.mxu0
        %821 = vmatprep.mubr.f32.mxu0 0.0
        %822 = vmatmul.mubr.f32.gmra.mxu0 %v629
        %v823 = vpop.f32.mrf.mxu0
        %v824 = vadd.f32 %v749, %v823
        %v825 = vpop.f32.mrf.mxu0
        %826 = vdwg.mxu0
        %s827 = scalar_lea.vmem [#allocation7], 256
        %v828 = vld [vmem:[%s827] sm:$0xff]
        %v829 = vld [vmem:[%s827 + $0x8] sm:$0xff]
        %v830 = vld [vmem:[%s827 + $0x10] sm:$0xff]
        %v831 = vld [vmem:[%s827 + $0x18] sm:$0xff]
        %v832 = vld [vmem:[%s827 + $0x20] sm:$0xff]
        %v833 = vld [vmem:[%s827 + $0x28] sm:$0xff]
        %v834 = vld [vmem:[%s827 + $0x30] sm:$0xff]
        %v835 = vld [vmem:[%s827 + $0x38] sm:$0xff]
        %v836 = vld [vmem:[%s827 + $0x40] sm:$0xff]
        %v837 = vld [vmem:[%s827 + $0x48] sm:$0xff]
        %v838 = vld [vmem:[%s827 + $0x50] sm:$0xff]
        %v839 = vld [vmem:[%s827 + $0x58] sm:$0xff]
        %v840 = vld [vmem:[%s827 + $0x60] sm:$0xff]
        %v841 = vld [vmem:[%s827 + $0x68] sm:$0xff]
        %v842 = vld [vmem:[%s827 + $0x70] sm:$0xff]
        %v843 = vld [vmem:[%s827 + $0x78] sm:$0xff]
        %v844 = vrot.slane %v633, 2
        %v845 = vrot.slane %v629, 2
        %v846 = vsel %vm343, %v844, %v845
        %v847 = vrot.slane %v634, 2
        %v848 = vsel %vm343, %v845, %v847
        %851 = vmatprep.subr.mxu0 0.0
        %852 = vmatpush1.msra.mxu0 %v843
        %853 = vmatprep.subr.mxu0 0.0
        %854 = vmatpush1.msra.mxu0 %v842
        %855 = vmatprep.subr.mxu0 0.0
        %856 = vmatpush1.msra.mxu0 %v841
        %857 = vmatprep.subr.mxu0 0.0
        %858 = vmatpush1.msra.mxu0 %v840
        %859 = vmatprep.subr.mxu0 0.0
        %860 = vmatpush1.msra.mxu0 %v839
        %861 = vmatprep.subr.mxu0 0.0
        %862 = vmatpush1.msra.mxu0 %v838
        %863 = vmatprep.subr.mxu0 0.0
        %864 = vmatpush1.msra.mxu0 %v837
        %865 = vmatprep.subr.mxu0 0.0
        %866 = vmatpush1.msra.mxu0 %v836
        %867 = vmatprep.subr.mxu0 0.0
        %868 = vmatpush1.msra.mxu0 %v835
        %869 = vmatprep.subr.mxu0 0.0
        %870 = vmatpush1.msra.mxu0 %v834
        %871 = vmatprep.subr.mxu0 0.0
        %872 = vmatpush1.msra.mxu0 %v833
        %873 = vmatprep.subr.mxu0 0.0
        %874 = vmatpush1.msra.mxu0 %v832
        %875 = vmatprep.subr.mxu0 0.0
        %876 = vmatpush1.msra.mxu0 %v831
        %877 = vmatprep.subr.mxu0 0.0
        %878 = vmatpush1.msra.mxu0 %v830
        %879 = vmatprep.subr.mxu0 0.0
        %880 = vmatpush1.msra.mxu0 %v829
        %881 = vmatprep.subr.mxu0 0.0
        %882 = vmatpush1.msra.mxu0 %v828
        %883 = vmatprep.subr.mxu0 0.0
        %884 = vmatpush2.msra.mxu0 0.0
        %885 = vmatprep.subr.mxu0 0.0
        %886 = vmatpush2.msra.mxu0 0.0
        %887 = vmatprep.subr.mxu0 0.0
        %888 = vmatpush2.msra.mxu0 0.0
        %889 = vmatprep.subr.mxu0 0.0
        %890 = vmatpush2.msra.mxu0 0.0
        %891 = vmatprep.subr.mxu0 0.0
        %892 = vmatpush2.msra.mxu0 0.0
        %893 = vmatprep.subr.mxu0 0.0
        %894 = vmatpush2.msra.mxu0 0.0
        %895 = vmatprep.subr.mxu0 0.0
        %896 = vmatpush2.msra.mxu0 0.0
        %897 = vmatprep.subr.mxu0 0.0
        %898 = vmatpush2.msra.mxu0 0.0
        %899 = vmatprep.subr.mxu0 0.0
        %900 = vmatpush2.msra.mxu0 0.0
        %901 = vmatprep.subr.mxu0 0.0
        %902 = vmatpush2.msra.mxu0 0.0
        %903 = vmatprep.subr.mxu0 0.0
        %904 = vmatpush2.msra.mxu0 0.0
        %905 = vmatprep.subr.mxu0 0.0
        %906 = vmatpush2.msra.mxu0 0.0
        %907 = vmatprep.subr.mxu0 0.0
        %908 = vmatpush2.msra.mxu0 0.0
        %909 = vmatprep.subr.mxu0 0.0
        %910 = vmatpush2.msra.mxu0 0.0
        %911 = vmatprep.subr.mxu0 0.0
        %912 = vmatpush2.msra.mxu0 0.0
        %913 = vmatprep.subr.mxu0 0.0
        %914 = vmatpush2.msra.mxu0 0.0
        %915 = vmatprep.mubr.f32.mxu0 0.0
        %916 = vmatmul.mubr.f32.gmra.mxu0 %v846
        %v917 = vpop.f32.mrf.mxu0
        %v918 = vadd.f32 0.0, %v917
        %v919 = vpop.f32.mrf.mxu0
        %920 = vmatprep.mubr.f32.mxu0 0.0
        %921 = vmatmul.mubr.f32.gmra.mxu0 %v848
        %v922 = vpop.f32.mrf.mxu0
        %v923 = vadd.f32 0.0, %v922
        %v924 = vpop.f32.mrf.mxu0
        %925 = vdwg.mxu0
        %v926 = vadd.f32 %v819, %v918
        %v927 = vadd.f32 %v824, %v923
        %v928 = vld [vmem:[%s6] sm:$0x1]
        %v930 = vlaneseq
        %v931 = vshrl.u32 %v930, 7
        %v932 = vsub.s32 0, %v931
        %v933 = vrot.slane %v928, %v932
        %v935 = vadd.f32 %v926, %v933
        %v936 = vadd.f32 %v927, %v933
        %v937 = vadd.f32 %v935, %v603
        %v938 = vadd.f32 %v936, %v609
        %v939 = vmax.f32 %v937, 0.0
        %v940 = vmax.f32 %v938, 0.0
        %941 = vst [vmem:[%s315] sm:$0xff] %v939
        %942 = vst [vmem:[%s315 + $0x8] sm:$0xff] %v940
        %s943 = sand.u32 %s183, 1
        %s944 = scalar_lea.sflag [#allocation4], %s943
        %s945 = sand.u32 %s183, 1
        %s946 = smul.addr %s945, 16
        %s947 = scalar_lea.vmem [#allocation8], %s946
        // Predicated region
        $region61: #{tpu_custom_call.1} parent=47 // pred_check
          %p948 = pneg %p193
        $region62: #{tpu_custom_call.1} parent=47 // pred_check_branch
          %950 = sbr.rel (%p948) target = $region64
        $region63: #{tpu_custom_call.1} parent=47 // pred_region
          %s952 = ssub.s32 256, 256
          %953 = vsyncadd %s944, %s952
          %s954 = smul.addr %s23, 2
          %s955 = smul.addr %s954, 128
          %s956 = scalar_lea.hbm %s7, %s955
          %s957 = sshll.u32 %s947, 4
          %s958 = int_to_ptr.vmem [resolvable:$true] %s957
          %963 = dma.vmem_to_hbm [thread:$0]  %s958, 256, %s956, %s944, 128, 128, 8
        $region64: #{tpu_custom_call.1} parent=47 // pred_fallthru
          _
      $region48: #{tpu_custom_call.1} parent=5 // pred_fallthru
        _
      %p964 = scmp.le.s32.totalorder 2, %s18
      // Predicated region
      $region65: #{tpu_custom_call.1} parent=5 // pred_check
        %p965 = pneg %p964
      $region66: #{tpu_custom_call.1} parent=5 // pred_check_branch
        %967 = sbr.rel (%p965) target = $region68
      $region67: #{tpu_custom_call.1} parent=5 // pred_region
        %s968 = ssub.s32 %s18, 2
        // Predicated region
        $region69: #{tpu_custom_call.1} parent=67 // pred_check
          %p969 = pneg %p199
        $region70: #{tpu_custom_call.1} parent=67 // pred_check_branch
          %971 = sbr.rel (%p969) target = $region72
        $region71: #{tpu_custom_call.1} parent=67 // pred_region
          %s972 = sand.u32 %s184, 1
          %s973 = scalar_lea.sflag [#allocation4], %s972
          %s974 = sand.u32 %s184, 1
          %s975 = smul.addr %s974, 16
          %s976 = scalar_lea.vmem [#allocation8], %s975
          %977 = dma.done %s973, 256
        $region72: #{tpu_custom_call.1} parent=67 // pred_fallthru
          _
      $region68: #{tpu_custom_call.1} parent=5 // pred_fallthru
        _
    $region6: #{tpu_custom_call.1} parent=1 // loop_footer
      %s22 = sadd.s32 1, %s18
    $region7: #{tpu_custom_call.1} parent=1 // loop_footer_branch
      %17 = sbr.rel target = $region3
    $region8: #{tpu_custom_call.1} parent=1 // loop_exit
      _
    %978 = vsyncpa [#allocation3], 1
    %s979 = scalar_lea.sflag [#allocation3], 1
    %980 = vsyncpa %s979, 1
    %981 = vsyncpa [#allocation6], 1
    %982 = vsyncpa [#allocation4], 1
    %s983 = scalar_lea.sflag [#allocation4], 1
    %984 = vsyncpa %s983, 1

</llo_original>
